<compile_context>
chip_gen: v6e
topology: v6e:2x2x1
jax: 0.10.0
libtpu: 0.0.40
codegen_flags: <defaults>
</compile_context>

<pallas_src>
import jax
import jax.numpy as jnp
from jax import lax
from jax.experimental import pallas as pl
from jax.experimental.pallas import tpu as pltpu


# ----------------------------------------------------------------------------
# Pallas kernel: fused  BN3 (folded)  +  SE  +  residual add
# ----------------------------------------------------------------------------
def _bn_se_residual_kernel(res_ref, iden_ref, scale_ref, shift_ref,
                           w1s_ref, b1_ref, w2l_ref, alpha_ref, o_ref):
    # res_ref, iden_ref, o_ref : (B, HWp, Cl)  channel-last, lane-dense (Cl = P*C)
    # scale_ref, shift_ref     : (1, Cl)  BN3 scale/shift, lane-tiled
    # w1s_ref                  : (Cl, mid)  SE conv1 weight with (scale/HW) folded in, lane-tiled
    # b1_ref                   : (1, mid)   shift @ w1^T  (BN shift contribution to the squeeze)
    # w2l_ref                  : (mid, Cl)  SE conv2 weight, lane-tiled
    # alpha_ref                : (1, 1) SMEM  SE PReLU slope (num_parameters=1)

    # --- squeeze: spatial sum of the *raw* conv2 output (BN3 + 1/HW folded into w1s).
    pooled = jnp.sum(res_ref[...].astype(jnp.float32), axis=1)            # (B, Cl)

    # --- excitation: 1x1 conv -> scalar PReLU -> 1x1 conv -> sigmoid (MXU, M=B).
    h = jnp.dot(pooled, w1s_ref[...],
                preferred_element_type=jnp.float32) + b1_ref[...]         # (B, mid)
    alpha = alpha_ref[0, 0]                                               # SMEM scalar
    h = jnp.where(h >= 0.0, h, alpha * h)
    gate = jax.nn.sigmoid(
        jnp.dot(h, w2l_ref[...], preferred_element_type=jnp.float32))     # (B, Cl)

    # --- fold the gate into the BN3 coefficients on the tiny (B, Cl) tensors.
    g_scale = scale_ref[...] * gate                                       # (B, Cl)
    g_shift = shift_ref[...] * gate                                       # (B, Cl)

    # --- single streaming pass: out = iden + res*(scale*gate) + shift*gate
    out = (iden_ref[...].astype(jnp.float32)
           + res_ref[...].astype(jnp.float32) * g_scale[:, None, :]
           + g_shift[:, None, :])
    o_ref[...] = out.astype(o_ref.dtype)


def _tpu_memory_hints():
    """Returns (target_block_bytes, min_grid_steps, vmem_cap_bytes) per TPU generation."""
    try:
        vmem = int(pltpu.get_tpu_info().vmem_capacity_bytes)
    except Exception:
        vmem = 64 << 20                       # conservative fallback (v7x-like)
    if vmem <= (64 << 20) + (1 << 20):
        # v7x-like: 64 MiB VMEM, 2 TensorCores/chip -> smaller blocks, >=2 steps per core.
        return (5 << 19), 4, (40 << 20)       # ~2.5 MiB blocks, grid >= 4, cap 40 MiB
    # v5e / v6e: 128 MiB VMEM, 1 TensorCore/chip.
    return (8 << 20), 2, (100 << 20)          # ~8 MiB blocks, grid >= 2, cap 100 MiB


def fused_bn_se_residual_add(res_nhwc, iden_nhwc, bn_scale, bn_shift,
                             se_w1, se_w2, se_alpha):
    """out = identity + SE(BN3(res)); res/iden NHWC with identical shapes."""
    N, Ho, Wo, C = res_nhwc.shape
    assert iden_nhwc.shape == res_nhwc.shape
    mid = se_w1.shape[0]
    HW = Ho * Wo

    # Lane packing: if C < 128 (and divides 128), fold spatial positions into the
    # lane axis so the stored last dim is a multiple of 128 (no masked vst).
    P = 1
    if C % 128 != 0 and 128 % C == 0 and HW % (128 // C) == 0:
        P = 128 // C
    HWp, Cl = HW // P, C * P

    res2 = res_nhwc.reshape(N, HWp, Cl)
    iden2 = iden_nhwc.reshape(N, HWp, Cl)

    scale = bn_scale.reshape(C).astype(jnp.float32)
    shift = bn_shift.reshape(C).astype(jnp.float32)
    w1t = jnp.transpose(se_w1.astype(jnp.float32))             # (C, mid)
    w2t = jnp.transpose(se_w2.astype(jnp.float32))             # (mid, C)

    # Fold 1/HW and the BN scale into the first SE matmul, the BN shift into a bias,
    # and pre-tile everything along the packed lane axis (lane j <-> channel j % C).
    w1s = jnp.tile((scale / float(HW))[:, None] * w1t, (P, 1))  # (Cl, mid)
    b1 = jnp.dot(shift[None, :], w1t)                           # (1, mid)
    w2l = jnp.tile(w2t, (1, P))                                 # (mid, Cl)
    scale_l = jnp.tile(scale[None, :], (1, P))                  # (1, Cl)
    shift_l = jnp.tile(shift[None, :], (1, P))                  # (1, Cl)
    alpha_arr = jnp.asarray(se_alpha, jnp.float32).reshape(1, 1)

    # --- generation-aware block sizing (mem-bound kernel: biggest safe block wins)
    target_block_bytes, min_grid, vmem_cap = _tpu_memory_hints()
    itemsize = res2.dtype.itemsize
    bytes_per_sample = HW * C * itemsize
    B = max(1, min(N, target_block_bytes // max(bytes_per_sample, 1)))
    if N >= min_grid:
        B = min(B, max(1, N // min_grid))      # keep >= min_grid steps for pipelining/megacore
    else:
        B = 1
    B = int(B)
    grid_n = pl.cdiv(N, B)

    # VMEM accounting: 3 streamed blocks double-buffered + constants double-buffered
    # + one f32 block of slack for compiler temporaries.  Clamped per generation.
    block_bytes = B * HWp * Cl * itemsize
    const_bytes = (2 * Cl * mid + 2 * Cl + mid) * 4
    resident = 3 * 2 * block_bytes + 2 * const_bytes + B * HWp * Cl * 4
    vmem_limit = int(min(max(resident + (2 << 20), 16 << 20), vmem_cap))

    out2 = pl.pallas_call(
        _bn_se_residual_kernel,
        out_shape=jax.ShapeDtypeStruct((N, HWp, Cl), res2.dtype),
        grid_spec=pltpu.PrefetchScalarGridSpec(
            num_scalar_prefetch=0,
            grid=(grid_n,),
            in_specs=[
                pl.BlockSpec((B, HWp, Cl), lambda n: (n, 0, 0)),     # res (conv2 output)
                pl.BlockSpec((B, HWp, Cl), lambda n: (n, 0, 0)),     # identity
                pl.BlockSpec((1, Cl), lambda n: (0, 0)),             # BN3 scale (lane-tiled)
                pl.BlockSpec((1, Cl), lambda n: (0, 0)),             # BN3 shift (lane-tiled)
                pl.BlockSpec((Cl, mid), lambda n: (0, 0)),           # SE w1^T * scale/HW
                pl.BlockSpec((1, mid), lambda n: (0, 0)),            # SE bias from BN shift
                pl.BlockSpec((mid, Cl), lambda n: (0, 0)),           # SE w2^T (lane-tiled)
                pl.BlockSpec(memory_space=pltpu.MemorySpace.SMEM),   # SE PReLU alpha
            ],
            out_specs=pl.BlockSpec((B, HWp, Cl), lambda n: (n, 0, 0)),
        ),
        compiler_params=pltpu.CompilerParams(
            dimension_semantics=("parallel",),
            vmem_limit_bytes=vmem_limit),
    )(res2, iden2, scale_l, shift_l, w1s, b1, w2l, alpha_arr)

    return out2.reshape(N, Ho, Wo, C)


# ----------------------------------------------------------------------------
# XLA plumbing for the rest of the block (NHWC, TPU-native layout)
# ----------------------------------------------------------------------------
def _conv2d_nhwc(x, w_oihw, stride, padding, precision):
    w_hwio = jnp.transpose(w_oihw, (2, 3, 1, 0))
    return lax.conv_general_dilated(
        x, w_hwio,
        window_strides=(stride, stride),
        padding=[(padding, padding), (padding, padding)],
        dimension_numbers=("NHWC", "HWIO", "NHWC"),
        precision=precision)


def _bn_scale_shift(gamma, beta, mean, var, eps=1e-5):
    scale = gamma / jnp.sqrt(var + eps)
    shift = beta - mean * scale
    return scale, shift


def residual_unit_irse_forward(x_nchw, params, stride=2,
                               conv_precision=lax.Precision.DEFAULT):
    """Forward of ResidualUnit_IRSE.  x_nchw: (N, Cin, H, W)."""
    x = jnp.transpose(x_nchw, (0, 2, 3, 1))                  # NHWC

    # ---- identity / downsample branch ----
    if params["downsample"] is None:                         # in == out: MaxPool2d(1, stride)
        identity = x[:, ::stride, ::stride, :]
    else:                                                    # Conv1x1(stride) + BN
        dw, (dg, db, dm, dv) = params["downsample"]
        identity = _conv2d_nhwc(x, dw, stride, 0, conv_precision)
        ds, dt = _bn_scale_shift(dg, db, dm, dv)
        identity = identity * ds + dt

    # ---- residual branch up to conv2 (BN3 + SE + add are fused in Pallas) ----
    s1, t1 = _bn_scale_shift(*params["bn1"])
    r = x * s1 + t1
    r = _conv2d_nhwc(r, params["conv1_w"], 1, 1, conv_precision)
    s2, t2 = _bn_scale_shift(*params["bn2"])
    r = r * s2 + t2
    a = params["prelu_alpha"]                                # per-channel PReLU
    r = jnp.where(r >= 0, r, a * r)
    r = _conv2d_nhwc(r, params["conv2_w"], stride, 1, conv_precision)

    s3, t3 = _bn_scale_shift(*params["bn3"])
    out_nhwc = fused_bn_se_residual_add(
        r, identity, s3, t3, params["se_w1"], params["se_w2"], params["se_alpha"])
    return jnp.transpose(out_nhwc, (0, 3, 1, 2))             # back to NCHW


# ----------------------------------------------------------------------------
# Pure-JAX reference (NCHW, PyTorch-like) for correctness checking
# ----------------------------------------------------------------------------
def _reference_forward(x, params, stride=2, eps=1e-5,
                       conv_precision=lax.Precision.HIGHEST):
    def conv_nchw(x, w, stride, padding):
        return lax.conv_general_dilated(
            x, w, (stride, stride), [(padding, padding)] * 2,
            dimension_numbers=("NCHW", "OIHW", "NCHW"),
            precision=conv_precision)

    def bn_nchw(x, p):
        g, b, m, v = p
        return ((x - m[None, :, None, None])
                / jnp.sqrt(v[None, :, None, None] + eps)
                * g[None, :, None, None] + b[None, :, None, None])

    if params["downsample"] is None:
        identity = x[:, :, ::stride, ::stride]
    else:
        dw, dbn = params["downsample"]
        identity = bn_nchw(conv_nchw(x, dw, stride, 0), dbn)

    r = bn_nchw(x, params["bn1"])
    r = conv_nchw(r, params["conv1_w"], 1, 1)
    r = bn_nchw(r, params["bn2"])
    a = params["prelu_alpha"][None, :, None, None]
    r = jnp.where(r >= 0, r, a * r)
    r = conv_nchw(r, params["conv2_w"], stride, 1)
    r = bn_nchw(r, params["bn3"])

    pooled = jnp.mean(r, axis=(2, 3))                         # (N, C)
    h = jnp.dot(pooled, params["se_w1"].T, precision=lax.Precision.HIGHEST)
    h = jnp.where(h >= 0, h, params["se_alpha"] * h)
    gate = jax.nn.sigmoid(
        jnp.dot(h, params["se_w2"].T, precision=lax.Precision.HIGHEST))
    r = r * gate[:, :, None, None]
    return identity + r


# ----------------------------------------------------------------------------
# Deterministic parameter construction + self-test
# ----------------------------------------------------------------------------
def make_params(key, cin, cout, reduction=16):
    mid = cout // reduction
    ks = jax.random.split(key, 12)

    def bn_p(k, c):
        k1, k2, k3, k4 = jax.random.split(k, 4)
        return (1.0 + 0.1 * jax.random.normal(k1, (c,), jnp.float32),   # gamma
                0.1 * jax.random.normal(k2, (c,), jnp.float32),         # beta
                0.1 * jax.random.normal(k3, (c,), jnp.float32),         # running_mean
                0.5 + jax.random.uniform(k4, (c,), jnp.float32))        # running_var

    params = {
        "bn1": bn_p(ks[0], cin),
        "conv1_w": jax.random.normal(ks[1], (cout, cin, 3, 3), jnp.float32) / ((cin * 9) ** 0.5),
        "bn2": bn_p(ks[2], cout),
        "prelu_alpha": jnp.full((cout,), 0.25, jnp.float32),             # nn.PReLU(cout) init
        "conv2_w": jax.random.normal(ks[3], (cout, cout, 3, 3), jnp.float32) / ((cout * 9) ** 0.5),
        "bn3": bn_p(ks[4], cout),
        "se_w1": jax.random.normal(ks[5], (mid, cout), jnp.float32) / (cout ** 0.5),
        "se_w2": jax.random.normal(ks[6], (cout, mid), jnp.float32) / (mid ** 0.5),
        "se_alpha": jnp.float32(0.25),                                   # nn.PReLU() init
    }
    if cin == cout:
        params["downsample"] = None                                      # MaxPool2d(1, stride)
    else:
        params["downsample"] = (
            jax.random.normal(ks[7], (cout, cin, 1, 1), jnp.float32) / (cin ** 0.5),
            bn_p(ks[8], cout))
    return params


def _check(name, x, params, stride=2):
    # Use exact-precision convs on both paths so the comparison is tight and stable.
    out = jax.block_until_ready(residual_unit_irse_forward(
        x, params, stride=stride, conv_precision=lax.Precision.HIGHEST))
    ref = jax.block_until_ready(_reference_forward(
        x, params, stride=stride, conv_precision=lax.Precision.HIGHEST))
    assert out.shape == ref.shape, (name, out.shape, ref.shape)
    maxdiff = float(jnp.max(jnp.abs(out - ref)))
    assert jnp.allclose(out, ref, atol=5e-3, rtol=5e-3), f"{name}: max|diff|={maxdiff}"


if __name__ == "__main__":
    key = jax.random.PRNGKey(0)
    k1, k2, k3, k4, k5, k6 = jax.random.split(key, 6)

    # Case 1: in_channel != out_channel  (Conv1x1+BN downsample branch), C=128
    x1 = jax.random.normal(k1, (4, 64, 8, 8), jnp.float32)
    p1 = make_params(k2, cin=64, cout=128)
    _check("conv_downsample_c128", x1, p1, stride=2)

    # Case 2: in_channel == out_channel  (MaxPool2d(1, stride) branch), C=128
    x2 = jax.random.normal(k3, (2, 128, 8, 8), jnp.float32)
    p2 = make_params(k4, cin=128, cout=128)
    _check("maxpool_downsample_c128", x2, p2, stride=2)

    # Case 3: C=64 stage -> exercises the lane-packing path (2 spatial pos / 128 lanes)
    x3 = jax.random.normal(k5, (2, 64, 8, 8), jnp.float32)
    p3 = make_params(k6, cin=64, cout=64)
    _check("maxpool_downsample_c64_packed", x3, p3, stride=2)

    # Also exercise the fast (DEFAULT conv precision) production path once.
    _ = jax.block_until_ready(residual_unit_irse_forward(x1, p1, stride=2))

    print("KERNEL_OK")
</pallas_src>

<mosaic_0001>
module attributes {stable_mosaic.version = 11 : i64} {
  func.func @_bn_se_residual_kernel(%arg0: i32, %arg1: memref<1x16x128xf32, #tpu.memory_space<vmem>>, %arg2: memref<1x16x128xf32, #tpu.memory_space<vmem>>, %arg3: memref<1x128xf32, #tpu.memory_space<vmem>>, %arg4: memref<1x128xf32, #tpu.memory_space<vmem>>, %arg5: memref<128x8xf32, #tpu.memory_space<vmem>>, %arg6: memref<1x8xf32, #tpu.memory_space<vmem>>, %arg7: memref<8x128xf32, #tpu.memory_space<vmem>>, %arg8: memref<1x1xf32, #tpu.memory_space<smem>>, %arg9: memref<1x16x128xf32, #tpu.memory_space<vmem>>) attributes {dimension_semantics = [#tpu.dimension_semantics<parallel>], iteration_bounds = array<i64: 4>, scalar_prefetch = 0 : i64, scratch_operands = 0 : i64, tpu.core_type = #tpu.core_type<tc>, window_params = [{transform_indices = @transform_0, window_bounds = array<i64: 1, 16, 128>}, {transform_indices = @transform_1, window_bounds = array<i64: 1, 16, 128>}, {pipeline_mode = #tpu.pipeline_mode<synchronous>, transform_indices = @transform_2, window_bounds = array<i64: 1, 128>}, {pipeline_mode = #tpu.pipeline_mode<synchronous>, transform_indices = @transform_3, window_bounds = array<i64: 1, 128>}, {pipeline_mode = #tpu.pipeline_mode<synchronous>, transform_indices = @transform_4, window_bounds = array<i64: 128, 8>}, {pipeline_mode = #tpu.pipeline_mode<synchronous>, transform_indices = @transform_5, window_bounds = array<i64: 1, 8>}, {pipeline_mode = #tpu.pipeline_mode<synchronous>, transform_indices = @transform_6, window_bounds = array<i64: 8, 128>}, {transform_indices = @transform_7, window_bounds = array<i64: 1, 1>}, {transform_indices = @transform_8, window_bounds = array<i64: 1, 16, 128>}]} {
    %c0 = arith.constant 0 : index
    %c0_0 = arith.constant 0 : index
    %c0_1 = arith.constant 0 : index
    %0 = vector.load %arg1[%c0, %c0_0, %c0_1] : memref<1x16x128xf32, #tpu.memory_space<vmem>>, vector<1x16x128xf32>
    %cst = arith.constant dense<0.000000e+00> : vector<1x128xf32>
    %1 = vector.multi_reduction <add>, %0, %cst [1] : vector<1x16x128xf32> to vector<1x128xf32>
    %c0_2 = arith.constant 0 : index
    %c0_3 = arith.constant 0 : index
    %2 = vector.load %arg5[%c0_2, %c0_3] : memref<128x8xf32, #tpu.memory_space<vmem>>, vector<128x8xf32>
    %cst_4 = arith.constant dense<0.000000e+00> : vector<1x8xf32>
    %3 = tpu.matmul %1, %2, %cst_4 {dimension_numbers = #tpu.dot_dimension_numbers<[1], [0], [0], [1], [0, 0, 1, 1], [], []>} : vector<1x128xf32>, vector<128x8xf32>, vector<1x8xf32> -> vector<1x8xf32>
    %c0_5 = arith.constant 0 : index
    %c0_6 = arith.constant 0 : index
    %4 = vector.load %arg6[%c0_5, %c0_6] : memref<1x8xf32, #tpu.memory_space<vmem>>, vector<1x8xf32>
    %5 = arith.addf %3, %4 : vector<1x8xf32>
    %c0_7 = arith.constant 0 : index
    %c0_8 = arith.constant 0 : index
    %6 = memref.load %arg8[%c0_7, %c0_8] : memref<1x1xf32, #tpu.memory_space<smem>>
    %cst_9 = arith.constant 0.000000e+00 : f32
    %7 = vector.broadcast %cst_9 : f32 to vector<1x8xf32>
    %8 = arith.cmpf oge, %5, %7 : vector<1x8xf32>
    %9 = vector.broadcast %6 : f32 to vector<1x8xf32>
    %10 = arith.mulf %9, %5 : vector<1x8xf32>
    %11 = arith.select %8, %5, %10 : vector<1x8xi1>, vector<1x8xf32>
    %c0_10 = arith.constant 0 : index
    %c0_11 = arith.constant 0 : index
    %12 = vector.load %arg7[%c0_10, %c0_11] : memref<8x128xf32, #tpu.memory_space<vmem>>, vector<8x128xf32>
    %cst_12 = arith.constant dense<0.000000e+00> : vector<1x128xf32>
    %13 = tpu.matmul %11, %12, %cst_12 {dimension_numbers = #tpu.dot_dimension_numbers<[1], [0], [0], [1], [0, 0, 1, 1], [], []>} : vector<1x8xf32>, vector<8x128xf32>, vector<1x128xf32> -> vector<1x128xf32>
    %14 = arith.negf %13 : vector<1x128xf32>
    %15 = math.exp %14 : vector<1x128xf32>
    %cst_13 = arith.constant 1.000000e+00 : f32
    %16 = vector.broadcast %cst_13 : f32 to vector<1x128xf32>
    %17 = arith.addf %16, %15 : vector<1x128xf32>
    %18 = arith.divf %16, %17 : vector<1x128xf32>
    %c0_14 = arith.constant 0 : index
    %c0_15 = arith.constant 0 : index
    %19 = vector.load %arg3[%c0_14, %c0_15] : memref<1x128xf32, #tpu.memory_space<vmem>>, vector<1x128xf32>
    %20 = arith.mulf %19, %18 : vector<1x128xf32>
    %c0_16 = arith.constant 0 : index
    %c0_17 = arith.constant 0 : index
    %21 = vector.load %arg4[%c0_16, %c0_17] : memref<1x128xf32, #tpu.memory_space<vmem>>, vector<1x128xf32>
    %22 = arith.mulf %21, %18 : vector<1x128xf32>
    %c0_18 = arith.constant 0 : index
    %c0_19 = arith.constant 0 : index
    %c0_20 = arith.constant 0 : index
    %23 = vector.load %arg2[%c0_18, %c0_19, %c0_20] : memref<1x16x128xf32, #tpu.memory_space<vmem>>, vector<1x16x128xf32>
    %c0_21 = arith.constant 0 : index
    %c0_22 = arith.constant 0 : index
    %c0_23 = arith.constant 0 : index
    %24 = vector.load %arg1[%c0_21, %c0_22, %c0_23] : memref<1x16x128xf32, #tpu.memory_space<vmem>>, vector<1x16x128xf32>
    %25 = vector.shape_cast %20 : vector<1x128xf32> to vector<1x1x128xf32>
    %26 = vector.broadcast %25 : vector<1x1x128xf32> to vector<1x16x128xf32>
    %27 = arith.mulf %24, %26 : vector<1x16x128xf32>
    %28 = arith.addf %23, %27 : vector<1x16x128xf32>
    %29 = vector.shape_cast %22 : vector<1x128xf32> to vector<1x1x128xf32>
    %30 = vector.broadcast %29 : vector<1x1x128xf32> to vector<1x16x128xf32>
    %31 = arith.addf %28, %30 : vector<1x16x128xf32>
    %c0_24 = arith.constant 0 : index
    %c0_25 = arith.constant 0 : index
    %c0_26 = arith.constant 0 : index
    %32 = vector.load %arg9[%c0_24, %c0_25, %c0_26] : memref<1x16x128xf32, #tpu.memory_space<vmem>>, vector<1x16x128xf32>
    tpu.vector_store %arg9[%c0_24, %c0_25, %c0_26], %31 {strides = array<i32>} : memref<1x16x128xf32, #tpu.memory_space<vmem>>, vector<1x16x128xf32>,
    return
  }
  func.func @transform_0(%arg0: i32) -> (i32, i32, i32) {
    %c0_i32 = arith.constant 0 : i32
    %c0_i32_0 = arith.constant 0 : i32
    %c0_i32_1 = arith.constant 0 : i32
    return %arg0, %c0_i32, %c0_i32_0 : i32, i32, i32
  }
  func.func @transform_1(%arg0: i32) -> (i32, i32, i32) {
    %c0_i32 = arith.constant 0 : i32
    %c0_i32_0 = arith.constant 0 : i32
    %c0_i32_1 = arith.constant 0 : i32
    return %arg0, %c0_i32, %c0_i32_0 : i32, i32, i32
  }
  func.func @transform_2(%arg0: i32) -> (i32, i32) {
    %c0_i32 = arith.constant 0 : i32
    %c0_i32_0 = arith.constant 0 : i32
    %c0_i32_1 = arith.constant 0 : i32
    return %c0_i32, %c0_i32_0 : i32, i32
  }
  func.func @transform_3(%arg0: i32) -> (i32, i32) {
    %c0_i32 = arith.constant 0 : i32
    %c0_i32_0 = arith.constant 0 : i32
    %c0_i32_1 = arith.constant 0 : i32
    return %c0_i32, %c0_i32_0 : i32, i32
  }
  func.func @transform_4(%arg0: i32) -> (i32, i32) {
    %c0_i32 = arith.constant 0 : i32
    %c0_i32_0 = arith.constant 0 : i32
    %c0_i32_1 = arith.constant 0 : i32
    return %c0_i32, %c0_i32_0 : i32, i32
  }
  func.func @transform_5(%arg0: i32) -> (i32, i32) {
    %c0_i32 = arith.constant 0 : i32
    %c0_i32_0 = arith.constant 0 : i32
    %c0_i32_1 = arith.constant 0 : i32
    return %c0_i32, %c0_i32_0 : i32, i32
  }
  func.func @transform_6(%arg0: i32) -> (i32, i32) {
    %c0_i32 = arith.constant 0 : i32
    %c0_i32_0 = arith.constant 0 : i32
    %c0_i32_1 = arith.constant 0 : i32
    return %c0_i32, %c0_i32_0 : i32, i32
  }
  func.func @transform_7(%arg0: i32) -> (i32, i32) {
    %c0_i32 = arith.constant 0 : i32
    %c0_i32_0 = arith.constant 0 : i32
    %c0_i32_1 = arith.constant 0 : i32
    return %c0_i32, %c0_i32_0 : i32, i32
  }
  func.func @transform_8(%arg0: i32) -> (i32, i32, i32) {
    %c0_i32 = arith.constant 0 : i32
    %c0_i32_0 = arith.constant 0 : i32
    %c0_i32_1 = arith.constant 0 : i32
    return %arg0, %c0_i32, %c0_i32_0 : i32, i32, i32
  }
}

</mosaic_0001>

<llo_original>
// kernel: tpu_custom_call.1
$region0: #{tpu_custom_call.1}
  #allocation0 [shape = 'u32[]', space=smem, size = 0x4, offset = 0x4, fixed_abs, tag = 'smem constant byte address 0x4 - core index']
  #allocation1 [shape = 'u32[144,128]{1,0:T(1,128)}', space=vmem, size = 0x12000, scoped, tag = 'internal scratch']
  #allocation2 [shape = 'f32[1,1]{1,0:T(1,128)S(6)}', space=smem, size = 0x200, scoped, tag = 'scoped memory for tpu_custom_call.1']
  %s0 = inlined_call_operand.vmem [shape: f32[4,16,128], index: 0, kind: input, shape index: {}]
  %s1 = inlined_call_operand.vmem [shape: f32[4,16,128], index: 1, kind: input, shape index: {}]
  %s2 = inlined_call_operand.vmem [shape: f32[1,128], index: 2, kind: input, shape index: {}]
  %s3 = inlined_call_operand.hbm [shape: f32[1,128], index: 3, kind: input, shape index: {}]
  %s4 = inlined_call_operand.vmem [shape: f32[128,8], index: 4, kind: input, shape index: {}]
  %s5 = inlined_call_operand.vmem [shape: f32[1,8], index: 5, kind: input, shape index: {}]
  %s6 = inlined_call_operand.vmem [shape: f32[8,128], index: 6, kind: input, shape index: {}]
  %s7 = inlined_call_operand.<no memory space> [shape: f32[1,1], index: 7, kind: input, shape index: {}]
  %s8 = inlined_call_operand.hbm [shape: f32[4,16,128], index: 8, kind: output, shape index: {}]
  %s9 = sld [smem:[#allocation0]]
  $region69: #{tpu_custom_call.1} parent=0
    _
  %s11 = ssub.s32 1, %s9
  %s12 = scalar_select 0, %s11, %s9
  %13 = sst [smem:[#allocation2]] %s7
  $region1: #{tpu_custom_call.1} parent=0
    #allocation3 [shape = 'u8[512]{0}', space=vmem, size = 0x400, scoped, tag = 'input window, operand 3, single buffered']
    #allocation4 [shape = 's32[2]{0}', space=sflag, size = 0x8, scoped, tag = 'scoped memory for tpu_custom_call.1']
    #allocation5 [shape = 's32[2]{0}', space=sflag, size = 0x8, scoped, tag = 'scoped memory for tpu_custom_call.1']
    #allocation6 [shape = 'u8[16384]{0}', space=vmem, size = 0x4000, scoped, tag = 'output window, operand 0']
    %14 = vsyncpa [#allocation4], 0
    %15 = vsyncpa [#allocation5], 0
    %s16 = scalar_lea.sflag [#allocation5], 1
    %17 = vsyncpa %s16, 0
    loop: start=0, step=1, limit=6
    $region2: #{tpu_custom_call.1} parent=1 // loop_pre_header
      _
    $region3: #{tpu_custom_call.1} parent=1 // loop_header
      %s19 = sphi 0, %s23
      %p20 = scmp.ge.s32.totalorder %s19, 6
      %s29 = sphi 0, %s31
      %s32 = sphi 0, %s29
      %s33 = sphi 0, %s32
      %s49 = sphi 0, %s33
      %s55 = sphi 0, %s57
      %s58 = sphi 0, %s55
      %s59 = sphi 0, %s58
      %s75 = sphi 0, %s59
      %s79 = sphi 0, %s79
      %s81 = sphi 0, %s79
      %s82 = sphi 0, %s81
      %s96 = sphi 0, %s82
      %s100 = sphi 0, %s100
      %s102 = sphi 0, %s100
      %s103 = sphi 0, %s102
      %s117 = sphi 0, %s103
      %s121 = sphi 0, %s121
      %s123 = sphi 0, %s121
      %s124 = sphi 0, %s123
      %s138 = sphi 0, %s124
      %s142 = sphi 0, %s142
      %s144 = sphi 0, %s142
      %s145 = sphi 0, %s144
      %s159 = sphi 0, %s145
      %s163 = sphi 0, %s163
      %s165 = sphi 0, %s163
      %s166 = sphi 0, %s165
      %s180 = sphi 0, %s166
      %s184 = sphi 0, %s184
      %s186 = sphi 0, %s184
      %s187 = sphi 0, %s186
      %s201 = sphi 0, %s187
      %s207 = sphi 0, %s209
      %s210 = sphi 0, %s207
      %s211 = sphi 0, %s210
      %s227 = sphi 0, %s211
    $region4: #{tpu_custom_call.1} parent=1 // loop_header_branch
      %22 = sbr.rel (%p20) target = $region8
    $region5: #{tpu_custom_call.1} parent=1 // loop_body
      %s24 = ssub.s32 %s19, 1
      %s25 = ssub.s32 %s19, 2
      %s26 = sadd.s32 %s19, 1
      %s27 = ssub.s32 %s19, %s26
      %p28 = scmp.eq.s32.totalorder %s27, 0
      %s30 = sadd.s32 %s29, 1
      %s31 = scalar_select %p28, %s29, %s30
      %p34 = pneg %p28
      %p35 = scmp.eq.s32.totalorder %s19, 3
      %p36 = por %p34, %p35
      %p37 = scmp.ne.s32.totalorder %s29, %s32
      %p38 = scmp.eq.s32.totalorder %s19, 0
      %p39 = por %p37, %p38
      %p40 = scmp.ne.s32.totalorder %s29, %s32
      %p41 = scmp.eq.s32.totalorder %s24, 3
      %p42 = por %p40, %p41
      %p43 = scmp.ne.s32.totalorder %s32, %s33
      %p44 = scmp.eq.s32.totalorder %s24, 0
      %p45 = por %p43, %p44
      %p46 = scmp.ne.s32.totalorder %s32, %s33
      %p47 = scmp.eq.s32.totalorder %s25, 3
      %p48 = por %p46, %p47
      %p50 = scmp.ne.s32.totalorder %s33, %s49
      %p51 = scmp.eq.s32.totalorder %s25, 0
      %p52 = por %p50, %p51
      %s53 = ssub.s32 %s19, %s26
      %p54 = scmp.eq.s32.totalorder %s53, 0
      %s56 = sadd.s32 %s55, 1
      %s57 = scalar_select %p54, %s55, %s56
      %p60 = pneg %p54
      %p61 = scmp.eq.s32.totalorder %s19, 3
      %p62 = por %p60, %p61
      %p63 = scmp.ne.s32.totalorder %s55, %s58
      %p64 = scmp.eq.s32.totalorder %s19, 0
      %p65 = por %p63, %p64
      %p66 = scmp.ne.s32.totalorder %s55, %s58
      %p67 = scmp.eq.s32.totalorder %s24, 3
      %p68 = por %p66, %p67
      %p69 = scmp.ne.s32.totalorder %s58, %s59
      %p70 = scmp.eq.s32.totalorder %s24, 0
      %p71 = por %p69, %p70
      %p72 = scmp.ne.s32.totalorder %s58, %s59
      %p73 = scmp.eq.s32.totalorder %s25, 3
      %p74 = por %p72, %p73
      %p76 = scmp.ne.s32.totalorder %s59, %s75
      %p77 = scmp.eq.s32.totalorder %s25, 0
      %p78 = por %p76, %p77
      %s80 = sadd.s32 %s79, 1
      %p83 = scmp.eq.s32.totalorder %s19, 3
      %p84 = scmp.ne.s32.totalorder %s79, %s81
      %p85 = scmp.eq.s32.totalorder %s19, 0
      %p86 = por %p84, %p85
      %p87 = scmp.ne.s32.totalorder %s79, %s81
      %p88 = scmp.eq.s32.totalorder %s24, 3
      %p89 = por %p87, %p88
      %p90 = scmp.ne.s32.totalorder %s81, %s82
      %p91 = scmp.eq.s32.totalorder %s24, 0
      %p92 = por %p90, %p91
      %p93 = scmp.ne.s32.totalorder %s81, %s82
      %p94 = scmp.eq.s32.totalorder %s25, 3
      %p95 = por %p93, %p94
      %p97 = scmp.ne.s32.totalorder %s82, %s96
      %p98 = scmp.eq.s32.totalorder %s25, 0
      %p99 = por %p97, %p98
      %s101 = sadd.s32 %s100, 1
      %p104 = scmp.eq.s32.totalorder %s19, 3
      %p105 = scmp.ne.s32.totalorder %s100, %s102
      %p106 = scmp.eq.s32.totalorder %s19, 0
      %p107 = por %p105, %p106
      %p108 = scmp.ne.s32.totalorder %s100, %s102
      %p109 = scmp.eq.s32.totalorder %s24, 3
      %p110 = por %p108, %p109
      %p111 = scmp.ne.s32.totalorder %s102, %s103
      %p112 = scmp.eq.s32.totalorder %s24, 0
      %p113 = por %p111, %p112
      %p114 = scmp.ne.s32.totalorder %s102, %s103
      %p115 = scmp.eq.s32.totalorder %s25, 3
      %p116 = por %p114, %p115
      %p118 = scmp.ne.s32.totalorder %s103, %s117
      %p119 = scmp.eq.s32.totalorder %s25, 0
      %p120 = por %p118, %p119
      %s122 = sadd.s32 %s121, 1
      %p125 = scmp.eq.s32.totalorder %s19, 3
      %p126 = scmp.ne.s32.totalorder %s121, %s123
      %p127 = scmp.eq.s32.totalorder %s19, 0
      %p128 = por %p126, %p127
      %p129 = scmp.ne.s32.totalorder %s121, %s123
      %p130 = scmp.eq.s32.totalorder %s24, 3
      %p131 = por %p129, %p130
      %p132 = scmp.ne.s32.totalorder %s123, %s124
      %p133 = scmp.eq.s32.totalorder %s24, 0
      %p134 = por %p132, %p133
      %p135 = scmp.ne.s32.totalorder %s123, %s124
      %p136 = scmp.eq.s32.totalorder %s25, 3
      %p137 = por %p135, %p136
      %p139 = scmp.ne.s32.totalorder %s124, %s138
      %p140 = scmp.eq.s32.totalorder %s25, 0
      %p141 = por %p139, %p140
      %s143 = sadd.s32 %s142, 1
      %p146 = scmp.eq.s32.totalorder %s19, 3
      %p147 = scmp.ne.s32.totalorder %s142, %s144
      %p148 = scmp.eq.s32.totalorder %s19, 0
      %p149 = por %p147, %p148
      %p150 = scmp.ne.s32.totalorder %s142, %s144
      %p151 = scmp.eq.s32.totalorder %s24, 3
      %p152 = por %p150, %p151
      %p153 = scmp.ne.s32.totalorder %s144, %s145
      %p154 = scmp.eq.s32.totalorder %s24, 0
      %p155 = por %p153, %p154
      %p156 = scmp.ne.s32.totalorder %s144, %s145
      %p157 = scmp.eq.s32.totalorder %s25, 3
      %p158 = por %p156, %p157
      %p160 = scmp.ne.s32.totalorder %s145, %s159
      %p161 = scmp.eq.s32.totalorder %s25, 0
      %p162 = por %p160, %p161
      %s164 = sadd.s32 %s163, 1
      %p167 = scmp.eq.s32.totalorder %s19, 3
      %p168 = scmp.ne.s32.totalorder %s163, %s165
      %p169 = scmp.eq.s32.totalorder %s19, 0
      %p170 = por %p168, %p169
      %p171 = scmp.ne.s32.totalorder %s163, %s165
      %p172 = scmp.eq.s32.totalorder %s24, 3
      %p173 = por %p171, %p172
      %p174 = scmp.ne.s32.totalorder %s165, %s166
      %p175 = scmp.eq.s32.totalorder %s24, 0
      %p176 = por %p174, %p175
      %p177 = scmp.ne.s32.totalorder %s165, %s166
      %p178 = scmp.eq.s32.totalorder %s25, 3
      %p179 = por %p177, %p178
      %p181 = scmp.ne.s32.totalorder %s166, %s180
      %p182 = scmp.eq.s32.totalorder %s25, 0
      %p183 = por %p181, %p182
      %s185 = sadd.s32 %s184, 1
      %p188 = scmp.eq.s32.totalorder %s19, 3
      %p189 = scmp.ne.s32.totalorder %s184, %s186
      %p190 = scmp.eq.s32.totalorder %s19, 0
      %p191 = por %p189, %p190
      %p192 = scmp.ne.s32.totalorder %s184, %s186
      %p193 = scmp.eq.s32.totalorder %s24, 3
      %p194 = por %p192, %p193
      %p195 = scmp.ne.s32.totalorder %s186, %s187
      %p196 = scmp.eq.s32.totalorder %s24, 0
      %p197 = por %p195, %p196
      %p198 = scmp.ne.s32.totalorder %s186, %s187
      %p199 = scmp.eq.s32.totalorder %s25, 3
      %p200 = por %p198, %p199
      %p202 = scmp.ne.s32.totalorder %s187, %s201
      %p203 = scmp.eq.s32.totalorder %s25, 0
      %p204 = por %p202, %p203
      %s205 = ssub.s32 %s19, %s26
      %p206 = scmp.eq.s32.totalorder %s205, 0
      %s208 = sadd.s32 %s207, 1
      %s209 = scalar_select %p206, %s207, %s208
      %p212 = pneg %p206
      %p213 = scmp.eq.s32.totalorder %s19, 3
      %p214 = por %p212, %p213
      %p215 = scmp.ne.s32.totalorder %s207, %s210
      %p216 = scmp.eq.s32.totalorder %s19, 0
      %p217 = por %p215, %p216
      %p218 = scmp.ne.s32.totalorder %s207, %s210
      %p219 = scmp.eq.s32.totalorder %s24, 3
      %p220 = por %p218, %p219
      %p221 = scmp.ne.s32.totalorder %s210, %s211
      %p222 = scmp.eq.s32.totalorder %s24, 0
      %p223 = por %p221, %p222
      %p224 = scmp.ne.s32.totalorder %s210, %s211
      %p225 = scmp.eq.s32.totalorder %s25, 3
      %p226 = por %p224, %p225
      %p228 = scmp.ne.s32.totalorder %s211, %s227
      %p229 = scmp.eq.s32.totalorder %s25, 0
      %p230 = por %p228, %p229
      %p231 = scmp.le.s32.totalorder 1, %s19
      %p232 = scmp.lt.s32.totalorder %s19, 5
      %p233 = pnand %p231, %p232
      %p234 = pneg %p233
      // Predicated region
      $region9: #{tpu_custom_call.1} parent=5 // pred_check
        _
      $region10: #{tpu_custom_call.1} parent=5 // pred_check_branch
        %236 = sbr.rel (%p233) target = $region12
      $region11: #{tpu_custom_call.1} parent=5 // pred_region
        %s237 = ssub.s32 %s19, 1
        // Predicated region
        $region13: #{tpu_custom_call.1} parent=11 // pred_check
          %p238 = pneg %p92
        $region14: #{tpu_custom_call.1} parent=11 // pred_check_branch
          %240 = sbr.rel (%p238) target = $region16
        $region15: #{tpu_custom_call.1} parent=11 // pred_region
          _
        $region16: #{tpu_custom_call.1} parent=11 // pred_fallthru
          _
        // Predicated region
        $region17: #{tpu_custom_call.1} parent=11 // pred_check
          %p241 = pneg %p113
        $region18: #{tpu_custom_call.1} parent=11 // pred_check_branch
          %243 = sbr.rel (%p241) target = $region20
        $region19: #{tpu_custom_call.1} parent=11 // pred_region
          %s245 = ssub.s32 16, 16
          %246 = vsyncadd [#allocation4], %s245
          %s248 = sshll.u32 [#allocation3], 4
          %s249 = int_to_ptr.vmem [resolvable:$true] %s248
          %251 = dma.hbm_to_vmem [thread:$0]  %s3, 16, %s249, [#allocation4]
        $region20: #{tpu_custom_call.1} parent=11 // pred_fallthru
          _
        // Predicated region
        $region21: #{tpu_custom_call.1} parent=11 // pred_check
          %p252 = pneg %p134
        $region22: #{tpu_custom_call.1} parent=11 // pred_check_branch
          %254 = sbr.rel (%p252) target = $region24
        $region23: #{tpu_custom_call.1} parent=11 // pred_region
          _
        $region24: #{tpu_custom_call.1} parent=11 // pred_fallthru
          _
        // Predicated region
        $region25: #{tpu_custom_call.1} parent=11 // pred_check
          %p255 = pneg %p155
        $region26: #{tpu_custom_call.1} parent=11 // pred_check_branch
          %257 = sbr.rel (%p255) target = $region28
        $region27: #{tpu_custom_call.1} parent=11 // pred_region
          _
        $region28: #{tpu_custom_call.1} parent=11 // pred_fallthru
          _
        // Predicated region
        $region29: #{tpu_custom_call.1} parent=11 // pred_check
          %p258 = pneg %p176
        $region30: #{tpu_custom_call.1} parent=11 // pred_check_branch
          %260 = sbr.rel (%p258) target = $region32
        $region31: #{tpu_custom_call.1} parent=11 // pred_region
          _
        $region32: #{tpu_custom_call.1} parent=11 // pred_fallthru
          _
        // Predicated region
        $region33: #{tpu_custom_call.1} parent=11 // pred_check
          %p261 = pneg %p197
        $region34: #{tpu_custom_call.1} parent=11 // pred_check_branch
          %263 = sbr.rel (%p261) target = $region36
        $region35: #{tpu_custom_call.1} parent=11 // pred_region
          _
        $region36: #{tpu_custom_call.1} parent=11 // pred_fallthru
          _
      $region12: #{tpu_custom_call.1} parent=5 // pred_fallthru
        _
      %p264 = scmp.lt.s32.totalorder %s19, 4
      // Predicated region
      $region37: #{tpu_custom_call.1} parent=5 // pred_check
        %p265 = pneg %p264
      $region38: #{tpu_custom_call.1} parent=5 // pred_check_branch
        %267 = sbr.rel (%p265) target = $region40
      $region39: #{tpu_custom_call.1} parent=5 // pred_region
        // Predicated region
        $region41: #{tpu_custom_call.1} parent=39 // pred_check
          %p268 = pneg %p39
        $region42: #{tpu_custom_call.1} parent=39 // pred_check_branch
          %270 = sbr.rel (%p268) target = $region44
        $region43: #{tpu_custom_call.1} parent=39 // pred_region
          %p271 = scmp.lt.s32.totalorder %s19, 3
          %s272 = scalar_select %p271, %s19, 3
          %s273 = smul.addr %s272, 2
          %s274 = smul.addr %s273, 8
          %s275 = scalar_lea.vmem %s0, %s274
        $region44: #{tpu_custom_call.1} parent=39 // pred_fallthru
          _
        // Predicated region
        $region45: #{tpu_custom_call.1} parent=39 // pred_check
          %p276 = pneg %p65
        $region46: #{tpu_custom_call.1} parent=39 // pred_check_branch
          %278 = sbr.rel (%p276) target = $region48
        $region47: #{tpu_custom_call.1} parent=39 // pred_region
          %p279 = scmp.lt.s32.totalorder %s19, 3
          %s280 = scalar_select %p279, %s19, 3
          %s281 = smul.addr %s280, 2
          %s282 = smul.addr %s281, 8
          %s283 = scalar_lea.vmem %s1, %s282
        $region48: #{tpu_custom_call.1} parent=39 // pred_fallthru
          _
      $region40: #{tpu_custom_call.1} parent=5 // pred_fallthru
        _
      %p284 = scmp.le.s32.totalorder 1, %s19
      %p285 = scmp.lt.s32.totalorder %s19, 5
      %p286 = pnand %p284, %p285
      %p287 = pneg %p286
      // Predicated region
      $region49: #{tpu_custom_call.1} parent=5 // pred_check
        _
      $region50: #{tpu_custom_call.1} parent=5 // pred_check_branch
        %289 = sbr.rel (%p286) target = $region52
      $region51: #{tpu_custom_call.1} parent=5 // pred_region
        %s290 = ssub.s32 %s19, 1
        // Predicated region
        $region53: #{tpu_custom_call.1} parent=51 // pred_check
          %p291 = pneg %p113
        $region54: #{tpu_custom_call.1} parent=51 // pred_check_branch
          %293 = sbr.rel (%p291) target = $region56
        $region55: #{tpu_custom_call.1} parent=51 // pred_region
          %294 = dma.done [#allocation4], 16
        $region56: #{tpu_custom_call.1} parent=51 // pred_fallthru
          _
        %p295 = scmp.lt.s32.totalorder %s24, 3
        %s296 = scalar_select %p295, %s24, 3
        %s297 = smul.addr %s296, 2
        %s298 = smul.addr %s297, 8
        %s299 = scalar_lea.vmem %s0, %s298
        %p300 = pneg %p45
        %p301 = pneg %p42
        %p302 = scmp.lt.s32.totalorder %s24, 3
        %s303 = scalar_select %p302, %s24, 3
        %s304 = smul.addr %s303, 2
        %s305 = smul.addr %s304, 8
        %s306 = scalar_lea.vmem %s1, %s305
        %p307 = pneg %p71
        %p308 = pneg %p68
        %p309 = pneg %p92
        %p310 = pneg %p89
        %p311 = pneg %p113
        %p312 = pneg %p110
        %p313 = pneg %p134
        %p314 = pneg %p131
        %p315 = pneg %p155
        %p316 = pneg %p152
        %p317 = pneg %p176
        %p318 = pneg %p173
        %p319 = pneg %p197
        %p320 = pneg %p194
        %p321 = pneg %p223
        %p322 = pneg %p220
        %s323 = sand.u32 %s210, 1
        %s324 = scalar_lea.sflag [#allocation5], %s323
        %s325 = sand.u32 %s210, 1
        %s326 = smul.addr %s325, 16
        %s327 = scalar_lea.vmem [#allocation6], %s326
        %p328 = scmp.lt.s32.totalorder %s24, 3
        %s329 = scalar_select %p328, %s24, 3
        %s330 = smul.addr %s329, 2
        %s331 = smul.addr %s330, 8
        %s332 = scalar_lea.vmem %s0, %s331
        %p333 = scmp.lt.s32.totalorder %s24, 3
        %s334 = scalar_select %p333, %s24, 3
        %s335 = smul.addr %s334, 2
        %s336 = smul.addr %s335, 8
        %s337 = scalar_lea.vmem %s1, %s336
        %v338 = vld [vmem:[%s332] sm:$0xff]
        %v339 = vld [vmem:[%s332 + $0x8] sm:$0xff]
        %v340 = vadd.f32 %v338, %v339
        %v341 = vrot.slane %v340, 4
        %v342 = vadd.f32 %v340, %v341
        %v343 = vrot.slane %v342, 2
        %v344 = vadd.f32 %v342, %v343
        %v345 = vrot.slane %v344, 1
        %v346 = vadd.f32 %v344, %v345
        %v347 = vld [vmem:[%s4] sm:$0xff]
        %v348 = vld [vmem:[%s4 + $0x8] sm:$0xff]
        %v349 = vld [vmem:[%s4 + $0x10] sm:$0xff]
        %v350 = vld [vmem:[%s4 + $0x18] sm:$0xff]
        %v351 = vld [vmem:[%s4 + $0x20] sm:$0xff]
        %v352 = vld [vmem:[%s4 + $0x28] sm:$0xff]
        %v353 = vld [vmem:[%s4 + $0x30] sm:$0xff]
        %v354 = vld [vmem:[%s4 + $0x38] sm:$0xff]
        %v355 = vld [vmem:[%s4 + $0x40] sm:$0xff]
        %v356 = vld [vmem:[%s4 + $0x48] sm:$0xff]
        %v357 = vld [vmem:[%s4 + $0x50] sm:$0xff]
        %v358 = vld [vmem:[%s4 + $0x58] sm:$0xff]
        %v359 = vld [vmem:[%s4 + $0x60] sm:$0xff]
        %v360 = vld [vmem:[%s4 + $0x68] sm:$0xff]
        %v361 = vld [vmem:[%s4 + $0x70] sm:$0xff]
        %v362 = vld [vmem:[%s4 + $0x78] sm:$0xff]
        %v363 = vld [vmem:[%s5] sm:$0x1]
        %364 = vmatprep.subr.mxu0 0.0
        %365 = vmatpush1.msra.mxu0 %v362
        %366 = vmatprep.subr.mxu0 0.0
        %367 = vmatpush1.msra.mxu0 %v361
        %368 = vmatprep.subr.mxu0 0.0
        %369 = vmatpush1.msra.mxu0 %v360
        %370 = vmatprep.subr.mxu0 0.0
        %371 = vmatpush1.msra.mxu0 %v359
        %372 = vmatprep.subr.mxu0 0.0
        %373 = vmatpush1.msra.mxu0 %v358
        %374 = vmatprep.subr.mxu0 0.0
        %375 = vmatpush1.msra.mxu0 %v357
        %376 = vmatprep.subr.mxu0 0.0
        %377 = vmatpush1.msra.mxu0 %v356
        %378 = vmatprep.subr.mxu0 0.0
        %379 = vmatpush1.msra.mxu0 %v355
        %380 = vmatprep.subr.mxu0 0.0
        %381 = vmatpush1.msra.mxu0 %v354
        %382 = vmatprep.subr.mxu0 0.0
        %383 = vmatpush1.msra.mxu0 %v353
        %384 = vmatprep.subr.mxu0 0.0
        %385 = vmatpush1.msra.mxu0 %v352
        %386 = vmatprep.subr.mxu0 0.0
        %387 = vmatpush1.msra.mxu0 %v351
        %388 = vmatprep.subr.mxu0 0.0
        %389 = vmatpush1.msra.mxu0 %v350
        %390 = vmatprep.subr.mxu0 0.0
        %391 = vmatpush1.msra.mxu0 %v349
        %392 = vmatprep.subr.mxu0 0.0
        %393 = vmatpush1.msra.mxu0 %v348
        %394 = vmatprep.subr.mxu0 0.0
        %395 = vmatpush1.msra.mxu0 %v347
        %396 = vmatprep.subr.mxu0 0.0
        %397 = vmatpush2.msra.mxu0 0.0
        %398 = vmatprep.subr.mxu0 0.0
        %399 = vmatpush2.msra.mxu0 0.0
        %400 = vmatprep.subr.mxu0 0.0
        %401 = vmatpush2.msra.mxu0 0.0
        %402 = vmatprep.subr.mxu0 0.0
        %403 = vmatpush2.msra.mxu0 0.0
        %404 = vmatprep.subr.mxu0 0.0
        %405 = vmatpush2.msra.mxu0 0.0
        %406 = vmatprep.subr.mxu0 0.0
        %407 = vmatpush2.msra.mxu0 0.0
        %408 = vmatprep.subr.mxu0 0.0
        %409 = vmatpush2.msra.mxu0 0.0
        %410 = vmatprep.subr.mxu0 0.0
        %411 = vmatpush2.msra.mxu0 0.0
        %412 = vmatprep.subr.mxu0 0.0
        %413 = vmatpush2.msra.mxu0 0.0
        %414 = vmatprep.subr.mxu0 0.0
        %415 = vmatpush2.msra.mxu0 0.0
        %416 = vmatprep.subr.mxu0 0.0
        %417 = vmatpush2.msra.mxu0 0.0
        %418 = vmatprep.subr.mxu0 0.0
        %419 = vmatpush2.msra.mxu0 0.0
        %420 = vmatprep.subr.mxu0 0.0
        %421 = vmatpush2.msra.mxu0 0.0
        %422 = vmatprep.subr.mxu0 0.0
        %423 = vmatpush2.msra.mxu0 0.0
        %424 = vmatprep.subr.mxu0 0.0
        %425 = vmatpush2.msra.mxu0 0.0
        %426 = vmatprep.subr.mxu0 0.0
        %427 = vmatpush2.msra.mxu0 0.0
        %428 = vmatprep.mubr.f32.mxu0 0.0
        %429 = vmatmul.mubr.f32.gmra.mxu0 %v346
        %v430 = vpop.f32.mrf.mxu0
        %v431 = vadd.f32 %v363, %v430
        %v432 = vpop.f32.mrf.mxu0
        %433 = vdwg.mxu0
        %s434 = sld [smem:[#allocation2]]
        %vm435 = vcmp.ge.f32.partialorder %v431, 0.0
        %v436 = vstv %s434
        %v437 = vmul.f32 %v436, %v431
        %v438 = vsel %vm435, %v431, %v437
        %v439 = vld [vmem:[%s6] sm:$0xff]
        %vm440 = vcmask 64512
        %v442 = vsel %vm440, %v438, 0
        %444 = vmatprep.subr.mxu0 0.0
        %445 = vmatpush1.msra.mxu0 0.0
        %446 = vmatprep.subr.mxu0 0.0
        %447 = vmatpush1.msra.mxu0 0.0
        %448 = vmatprep.subr.mxu0 0.0
        %449 = vmatpush1.msra.mxu0 0.0
        %450 = vmatprep.subr.mxu0 0.0
        %451 = vmatpush1.msra.mxu0 0.0
        %452 = vmatprep.subr.mxu0 0.0
        %453 = vmatpush1.msra.mxu0 0.0
        %454 = vmatprep.subr.mxu0 0.0
        %455 = vmatpush1.msra.mxu0 0.0
        %456 = vmatprep.subr.mxu0 0.0
        %457 = vmatpush1.msra.mxu0 0.0
        %458 = vmatprep.subr.mxu0 0.0
        %459 = vmatpush1.msra.mxu0 0.0
        %460 = vmatprep.subr.mxu0 0.0
        %461 = vmatpush1.msra.mxu0 0.0
        %462 = vmatprep.subr.mxu0 0.0
        %463 = vmatpush1.msra.mxu0 0.0
        %464 = vmatprep.subr.mxu0 0.0
        %465 = vmatpush1.msra.mxu0 0.0
        %466 = vmatprep.subr.mxu0 0.0
        %467 = vmatpush1.msra.mxu0 0.0
        %468 = vmatprep.subr.mxu0 0.0
        %469 = vmatpush1.msra.mxu0 0.0
        %470 = vmatprep.subr.mxu0 0.0
        %471 = vmatpush1.msra.mxu0 0.0
        %472 = vmatprep.subr.mxu0 0.0
        %473 = vmatpush1.msra.mxu0 0.0
        %474 = vmatprep.subr.mxu0 0.0
        %475 = vmatpush1.msra.mxu0 %v439
        %476 = vmatprep.subr.mxu0 0.0
        %477 = vmatpush2.msra.mxu0 0.0
        %478 = vmatprep.subr.mxu0 0.0
        %479 = vmatpush2.msra.mxu0 0.0
        %480 = vmatprep.subr.mxu0 0.0
        %481 = vmatpush2.msra.mxu0 0.0
        %482 = vmatprep.subr.mxu0 0.0
        %483 = vmatpush2.msra.mxu0 0.0
        %484 = vmatprep.subr.mxu0 0.0
        %485 = vmatpush2.msra.mxu0 0.0
        %486 = vmatprep.subr.mxu0 0.0
        %487 = vmatpush2.msra.mxu0 0.0
        %488 = vmatprep.subr.mxu0 0.0
        %489 = vmatpush2.msra.mxu0 0.0
        %490 = vmatprep.subr.mxu0 0.0
        %491 = vmatpush2.msra.mxu0 0.0
        %492 = vmatprep.subr.mxu0 0.0
        %493 = vmatpush2.msra.mxu0 0.0
        %494 = vmatprep.subr.mxu0 0.0
        %495 = vmatpush2.msra.mxu0 0.0
        %496 = vmatprep.subr.mxu0 0.0
        %497 = vmatpush2.msra.mxu0 0.0
        %498 = vmatprep.subr.mxu0 0.0
        %499 = vmatpush2.msra.mxu0 0.0
        %500 = vmatprep.subr.mxu0 0.0
        %501 = vmatpush2.msra.mxu0 0.0
        %502 = vmatprep.subr.mxu0 0.0
        %503 = vmatpush2.msra.mxu0 0.0
        %504 = vmatprep.subr.mxu0 0.0
        %505 = vmatpush2.msra.mxu0 0.0
        %506 = vmatprep.subr.mxu0 0.0
        %507 = vmatpush2.msra.mxu0 0.0
        %508 = vmatprep.mubr.f32.mxu0 0.0
        %509 = vmatmul.mubr.f32.gmra.mxu0 %v442
        %v510 = vpop.f32.mrf.mxu0
        %v511 = vadd.f32 0.0, %v510
        %v512 = vpop.f32.mrf.mxu0
        %513 = vdwg.mxu0
        %v514 = vxor.u32 %v511, 2147483648
        %v515 = vmul.f32 %v514, 1.442695
        %v516 = vpow.pop %v515
        %v517 = vadd.f32 %v516, 1.0
        %v518 = vrcp.pop %v517
        %v519 = vmul.f32 1.0, %v518
        %v520 = vld [vmem:[%s2] sm:$0x1]
        %v521 = vmul.f32 %v520, %v519
        %v522 = vld [vmem:[#allocation3] sm:$0x1]
        %v523 = vmul.f32 %v522, %v519
        %v524 = vld [vmem:[%s337] sm:$0xff]
        %v525 = vld [vmem:[%s337 + $0x8] sm:$0xff]
        %v527 = vlaneseq
        %v528 = vshrl.u32 %v527, 7
        %v529 = vsub.s32 0, %v528
        %v530 = vrot.slane %v521, %v529
        %v532 = vmul.f32 %v338, %v530
        %v533 = vmul.f32 %v339, %v530
        %v534 = vadd.f32 %v524, %v532
        %v535 = vadd.f32 %v525, %v533
        %v537 = vlaneseq
        %v538 = vshrl.u32 %v537, 7
        %v539 = vsub.s32 0, %v538
        %v540 = vrot.slane %v523, %v539
        %v542 = vadd.f32 %v534, %v540
        %v543 = vadd.f32 %v535, %v540
        %544 = vst [vmem:[%s327] sm:$0xff] %v542
        %545 = vst [vmem:[%s327 + $0x8] sm:$0xff] %v543
        %s546 = sand.u32 %s210, 1
        %s547 = scalar_lea.sflag [#allocation5], %s546
        %s548 = sand.u32 %s210, 1
        %s549 = smul.addr %s548, 16
        %s550 = scalar_lea.vmem [#allocation6], %s549
        // Predicated region
        $region57: #{tpu_custom_call.1} parent=51 // pred_check
          %p551 = pneg %p220
        $region58: #{tpu_custom_call.1} parent=51 // pred_check_branch
          %553 = sbr.rel (%p551) target = $region60
        $region59: #{tpu_custom_call.1} parent=51 // pred_region
          %s555 = ssub.s32 256, 256
          %556 = vsyncadd %s547, %s555
          %s557 = smul.addr %s24, 2
          %s558 = smul.addr %s557, 128
          %s559 = scalar_lea.hbm %s8, %s558
          %s560 = sshll.u32 %s550, 4
          %s561 = int_to_ptr.vmem [resolvable:$true] %s560
          %566 = dma.vmem_to_hbm [thread:$0]  %s561, 256, %s559, %s547, 128, 128, 8
        $region60: #{tpu_custom_call.1} parent=51 // pred_fallthru
          _
      $region52: #{tpu_custom_call.1} parent=5 // pred_fallthru
        _
      %p567 = scmp.le.s32.totalorder 2, %s19
      // Predicated region
      $region61: #{tpu_custom_call.1} parent=5 // pred_check
        %p568 = pneg %p567
      $region62: #{tpu_custom_call.1} parent=5 // pred_check_branch
        %570 = sbr.rel (%p568) target = $region64
      $region63: #{tpu_custom_call.1} parent=5 // pred_region
        %s571 = ssub.s32 %s19, 2
        // Predicated region
        $region65: #{tpu_custom_call.1} parent=63 // pred_check
          %p572 = pneg %p226
        $region66: #{tpu_custom_call.1} parent=63 // pred_check_branch
          %574 = sbr.rel (%p572) target = $region68
        $region67: #{tpu_custom_call.1} parent=63 // pred_region
          %s575 = sand.u32 %s211, 1
          %s576 = scalar_lea.sflag [#allocation5], %s575
          %s577 = sand.u32 %s211, 1
          %s578 = smul.addr %s577, 16
          %s579 = scalar_lea.vmem [#allocation6], %s578
          %580 = dma.done %s576, 256
        $region68: #{tpu_custom_call.1} parent=63 // pred_fallthru
          _
      $region64: #{tpu_custom_call.1} parent=5 // pred_fallthru
        _
    $region6: #{tpu_custom_call.1} parent=1 // loop_footer
      %s23 = sadd.s32 1, %s19
    $region7: #{tpu_custom_call.1} parent=1 // loop_footer_branch
      %18 = sbr.rel target = $region3
    $region8: #{tpu_custom_call.1} parent=1 // loop_exit
      _
    %581 = vsyncpa [#allocation4], 1
    %s582 = scalar_lea.sflag [#allocation4], 1
    %583 = vsyncpa %s582, 1
    %584 = vsyncpa [#allocation5], 1
    %s585 = scalar_lea.sflag [#allocation5], 1
    %586 = vsyncpa %s585, 1

</llo_original>
